<compile_context>
chip_gen: v7x
topology: tpu7x:2x2x1
jax: 0.10.0
libtpu: 0.0.40
codegen_flags: <defaults>
</compile_context>

<pallas_src>
import functools

import jax
import jax.numpy as jnp
from jax.experimental import pallas as pl
from jax.experimental.pallas import tpu as pltpu


# --------------------------------------------------------------------------- #
# Kernels
# --------------------------------------------------------------------------- #
def _ffn_kernel_tiled(x_ref, w1_ref, b1_ref, w2_ref, b2_ref, o_ref, acc_ref):
    # x_ref  : (tm, d_model)        w1_ref : (d_model, tf)    b1_ref : (1, tf)  f32
    # w2_ref : (tf, d_model)        b2_ref : (1, d_model) f32
    # o_ref  : (tm, d_model)        acc_ref: (tm, d_model) f32 scratch
    k = pl.program_id(1)

    @pl.when(k == 0)
    def _init():
        acc_ref[...] = jnp.zeros_like(acc_ref)

    # hidden chunk: relu(x @ W1[:, chunk] + b1[chunk]), f32 accumulation on MXU.
    h = jnp.dot(x_ref[...], w1_ref[...], preferred_element_type=jnp.float32)
    h = jnp.maximum(h + b1_ref[...], 0.0)

    # TODO(synk): dropout is identity (eval mode); training-mode masking would
    # use pltpu.prng_seed + pltpu.prng_random_bits on `h` here.

    # Second matmul chunk accumulates into the resident f32 scratch.  Cast h
    # back to the input dtype so bf16 inputs stay on the fast MXU path.
    acc_ref[...] += jnp.dot(h.astype(x_ref.dtype), w2_ref[...],
                            preferred_element_type=jnp.float32)

    @pl.when(k == pl.num_programs(1) - 1)
    def _finalize():
        o_ref[...] = (acc_ref[...] + b2_ref[...]).astype(o_ref.dtype)


def _ffn_kernel_resident(x_ref, w1_ref, b1_ref, w2_ref, b2_ref, o_ref):
    # Whole W1/W2 resident in VMEM: two back-to-back dots, no accumulator RMW.
    h = jnp.dot(x_ref[...], w1_ref[...], preferred_element_type=jnp.float32)
    h = jnp.maximum(h + b1_ref[...], 0.0)
    # TODO(synk): dropout is identity (eval mode).
    y = jnp.dot(h.astype(x_ref.dtype), w2_ref[...],
                preferred_element_type=jnp.float32)
    o_ref[...] = (y + b2_ref[...]).astype(o_ref.dtype)


# --------------------------------------------------------------------------- #
# Helpers
# --------------------------------------------------------------------------- #
def _round_up(x, m):
    return ((x + m - 1) // m) * m


def _vmem_capacity_bytes():
    """Physical VMEM of the current chip; safe fallback = 64 MiB (v7x floor)."""
    try:
        return int(pltpu.get_tpu_info().vmem_capacity_bytes)
    except Exception:
        return 64 * 1024 * 1024


def torch_linear_to_kernel_layout(w, b, dtype=None):
    """One-time conversion from PyTorch nn.Linear layout [out, in] -> [in, out].

    Pass dtype=jnp.bfloat16 to also cast weights once in HBM — strongly
    recommended on v5e/v6e (bf16-native MXU, 2x less weight DMA traffic).
    """
    w_t = w.T
    if dtype is not None:
        w_t = w_t.astype(dtype)
        b = b.astype(dtype)
    return w_t, b


# --------------------------------------------------------------------------- #
# Wrapper
# --------------------------------------------------------------------------- #
def positionwise_feed_forward(x, w1_t, b1, w2_t, b2, *, tm=None, tf=None,
                              force_tiled=False):
    """FFN forward:  y = relu(x @ w1_t + b1) @ w2_t + b2   (dropout = identity).

    Args:
      x   : [B, S, d_model]
      w1_t: [d_model, d_ff]   (nn.Linear(d_model, d_ff).weight.T, transposed ONCE)
      b1  : [d_ff]
      w2_t: [d_ff, d_model]   (nn.Linear(d_ff, d_model).weight.T, transposed ONCE)
      b2  : [d_model]
      tm  : optional row tile over B*S (default generation-aware, 512-1024)
      tf  : optional d_ff (reduction) tile (default generation-aware, 512-1024)
      force_tiled: skip the resident-weights fast path (testing / huge models).
    """
    B, S, d_model = x.shape
    d_ff = w1_t.shape[1]
    M = B * S
    x_item = jnp.dtype(x.dtype).itemsize
    w_item = jnp.dtype(w1_t.dtype).itemsize

    # ---- generation-aware VMEM budget & tile defaults ------------------------
    vmem_cap = _vmem_capacity_bytes()             # 64 MiB (v7x) .. 128 MiB (v5e/v6e)
    budget = int(0.75 * vmem_cap)                 # scoped working-set target
    big_vmem = vmem_cap >= 96 * 1024 * 1024
    tm_default = 1024 if big_vmem else 512        # AI >= roofline balance point
    tf_default = 1024 if big_vmem else 512

    # ---- flatten rows; pad only to the 8-row sublane granule -----------------
    M_pad = _round_up(max(M, 8), 8)
    x2d = x.reshape(M, d_model)
    if M_pad != M:
        x2d = jnp.pad(x2d, ((0, M_pad - M), (0, 0)))
    # Biases pre-cast to f32 once in HBM -> no per-chunk VPU cast in the kernel.
    b1f = b1.reshape(1, d_ff).astype(jnp.float32)
    b2f = b2.reshape(1, d_model).astype(jnp.float32)

    # ======================================================================== #
    # Fast path: both weights resident in VMEM (DMA'd once total).
    # ======================================================================== #
    def _resident_bytes(tm_):
        return (2 * 2 * tm_ * d_model * x_item          # x + out tiles, 2-buffered
                + 2 * 2 * d_model * d_ff * w_item       # W1 + W2 (worst-case 2 bufs)
                + 2 * (d_ff + d_model) * 4              # f32 biases
                + tm_ * d_ff * 4)                       # transient f32 hidden

    use_resident = False
    tm_res = 8
    if (not force_tiled) and tf is None:
        tm_res = tm_default if tm is None else _round_up(max(tm, 8), 8)
        tm_res = max(8, min(_round_up(tm_res, 8), M_pad))
        while tm_res > 8 and _resident_bytes(tm_res) > budget:
            tm_res = max(8, _round_up(tm_res // 2, 8))
        use_resident = _resident_bytes(tm_res) <= budget

    if use_resident:
        n_row_tiles = pl.cdiv(M_pad, tm_res)
        est = _resident_bytes(tm_res)
        vmem_limit = min(int(0.9 * vmem_cap),
                         max(32 * 1024 * 1024, est + (8 << 20)))
        flops = 4 * M_pad * d_model * d_ff
        bytes_accessed = (2 * M_pad * d_model * x_item       # x read + y write
                          + 2 * d_model * d_ff * w_item      # weights read ONCE
                          + (d_ff + d_model) * 4)            # biases
        cost = pl.CostEstimate(flops=flops, transcendentals=0,
                               bytes_accessed=int(bytes_accessed))

        out2d = pl.pallas_call(
            _ffn_kernel_resident,
            out_shape=jax.ShapeDtypeStruct((M_pad, d_model), x.dtype),
            grid_spec=pltpu.PrefetchScalarGridSpec(
                num_scalar_prefetch=0,
                grid=(n_row_tiles,),
                in_specs=[
                    pl.BlockSpec((tm_res, d_model), lambda i: (i, 0)),  # x rows
                    pl.BlockSpec((d_model, d_ff), lambda i: (0, 0)),    # W1 (resident)
                    pl.BlockSpec((1, d_ff), lambda i: (0, 0)),          # b1 (resident)
                    pl.BlockSpec((d_ff, d_model), lambda i: (0, 0)),    # W2 (resident)
                    pl.BlockSpec((1, d_model), lambda i: (0, 0)),       # b2 (resident)
                ],
                out_specs=pl.BlockSpec((tm_res, d_model), lambda i: (i, 0)),
            ),
            compiler_params=pltpu.CompilerParams(
                dimension_semantics=("parallel",),
                vmem_limit_bytes=int(vmem_limit)),
            cost_estimate=cost,
        )(x2d, w1_t, b1f, w2_t, b2f)

        if M_pad != M:
            out2d = out2d[:M]
        return out2d.reshape(B, S, d_model)

    # ======================================================================== #
    # Streamed path: rows tiled ("parallel"), d_ff chunks ("arbitrary").
    # ======================================================================== #
    tm_t = tm_default if tm is None else _round_up(max(tm, 8), 8)
    tm_t = max(8, min(_round_up(tm_t, 8), M_pad))
    if tf is None:
        tf_t = tf_default
    else:
        tf_t = max(128, _round_up(tf, 128))
    if tf_t >= d_ff:
        tf_t = d_ff                      # single k step; full-extent block is legal

    def _tiled_bytes(tm_, tf_):
        return (2 * (tm_ * d_model * x_item          # x tile
                     + d_model * tf_ * w_item        # W1 chunk
                     + tf_ * d_model * w_item        # W2 chunk
                     + tf_ * 4 + d_model * 4         # f32 bias chunks
                     + tm_ * d_model * x_item)       # out tile
                + tm_ * d_model * 4                  # persistent f32 accumulator
                + tm_ * tf_ * 4)                     # transient f32 hidden chunk

    if tm is None or tf is None:
        while _tiled_bytes(tm_t, tf_t) > budget:
            if tm is None and tm_t > 256:
                tm_t = _round_up(tm_t // 2, 8)
            elif tf is None and tf_t > 256 and tf_t != d_ff:
                tf_t //= 2
            elif tm is None and tm_t > 8:
                tm_t = _round_up(tm_t // 2, 8)
            else:
                break

    # Pad d_ff ONCE so tf_t divides it; zero-padded W1 cols / W2 rows / b1
    # entries contribute exactly 0 to the output (relu(0)=0, 0 @ W2 = 0).
    d_ff_p = _round_up(d_ff, tf_t)
    if d_ff_p != d_ff:
        w1_p = jnp.pad(w1_t, ((0, 0), (0, d_ff_p - d_ff)))
        w2_p = jnp.pad(w2_t, ((0, d_ff_p - d_ff), (0, 0)))
        b1_p = jnp.pad(b1f, ((0, 0), (0, d_ff_p - d_ff)))
    else:
        w1_p, w2_p, b1_p = w1_t, w2_t, b1f

    n_row_tiles = pl.cdiv(M_pad, tm_t)
    n_ff_tiles = d_ff_p // tf_t

    est = _tiled_bytes(tm_t, tf_t)
    vmem_limit = min(int(0.9 * vmem_cap),
                     max(32 * 1024 * 1024, est + (8 << 20)))
    flops = 4 * M_pad * d_model * d_ff_p
    bytes_accessed = (2 * M_pad * d_model * x_item                 # x read + y write
                      + n_row_tiles * 2 * d_model * d_ff_p * w_item  # streamed weights
                      + (d_ff_p + d_model) * 4)                    # biases
    cost = pl.CostEstimate(flops=flops, transcendentals=0,
                           bytes_accessed=int(bytes_accessed))

    out2d = pl.pallas_call(
        _ffn_kernel_tiled,
        out_shape=jax.ShapeDtypeStruct((M_pad, d_model), x.dtype),
        grid_spec=pltpu.PrefetchScalarGridSpec(
            num_scalar_prefetch=0,
            grid=(n_row_tiles, n_ff_tiles),
            in_specs=[
                pl.BlockSpec((tm_t, d_model), lambda i, k: (i, 0)),   # x rows
                pl.BlockSpec((d_model, tf_t), lambda i, k: (0, k)),   # W1 chunk
                pl.BlockSpec((1, tf_t), lambda i, k: (0, k)),         # b1 chunk (f32)
                pl.BlockSpec((tf_t, d_model), lambda i, k: (k, 0)),   # W2 chunk
                pl.BlockSpec((1, d_model), lambda i, k: (0, 0)),      # b2 (f32)
            ],
            out_specs=pl.BlockSpec((tm_t, d_model), lambda i, k: (i, 0)),
            scratch_shapes=[pltpu.VMEM((tm_t, d_model), jnp.float32)],
        ),
        compiler_params=pltpu.CompilerParams(
            dimension_semantics=("parallel", "arbitrary"),
            vmem_limit_bytes=int(vmem_limit)),
        cost_estimate=cost,
    )(x2d, w1_p, b1_p, w2_p, b2f)

    if M_pad != M:
        out2d = out2d[:M]
    return out2d.reshape(B, S, d_model)


# --------------------------------------------------------------------------- #
# Demo / correctness check
# --------------------------------------------------------------------------- #
def _init_linear_kernel_layout(key, in_features, out_features, dtype=jnp.float32):
    """nn.Linear-style init U(-1/sqrt(fan_in), 1/sqrt(fan_in)), stored [in, out]."""
    kw, kb = jax.random.split(key)
    bound = 1.0 / (in_features ** 0.5)
    w_t = jax.random.uniform(kw, (in_features, out_features), dtype,
                             minval=-bound, maxval=bound)
    b = jax.random.uniform(kb, (out_features,), dtype,
                           minval=-bound, maxval=bound)
    return w_t, b


if __name__ == "__main__":
    B, S, d_model, d_ff = 2, 8, 32, 256

    key = jax.random.PRNGKey(0)
    kx, k1, k2 = jax.random.split(key, 3)

    x = jax.random.normal(kx, (B, S, d_model), dtype=jnp.float32)
    # Weights stored pre-transposed ([in, out]) at init time — no per-call .T.
    w1_t, b1 = _init_linear_kernel_layout(k1, d_model, d_ff)   # d_model -> d_ff
    w2_t, b2 = _init_linear_kernel_layout(k2, d_ff, d_model)   # d_ff -> d_model

    # Plain-JAX reference (eval-mode dropout = identity).
    ref = jnp.maximum(x @ w1_t + b1, 0.0) @ w2_t + b2

    # Path 1: resident-weights fast path (auto-selected for small weights).
    ffn_fast = jax.jit(positionwise_feed_forward)
    out_fast = jax.block_until_ready(ffn_fast(x, w1_t, b1, w2_t, b2))

    # Path 2: generic streamed path (forced; exercises the k-accumulator logic).
    ffn_tiled = jax.jit(functools.partial(positionwise_feed_forward,
                                          force_tiled=True, tm=8, tf=128))
    out_tiled = jax.block_until_ready(ffn_tiled(x, w1_t, b1, w2_t, b2))

    assert out_fast.shape == (B, S, d_model)
    assert out_tiled.shape == (B, S, d_model)
    # MXU default precision on f32 operands is slightly looser than exact f32.
    assert jnp.allclose(out_fast, ref, atol=1e-2, rtol=1e-2), (
        float(jnp.max(jnp.abs(out_fast - ref))))
    assert jnp.allclose(out_tiled, ref, atol=1e-2, rtol=1e-2), (
        float(jnp.max(jnp.abs(out_tiled - ref))))

    print("KERNEL_OK")
</pallas_src>

<mosaic_0001>
module attributes {stable_mosaic.version = 11 : i64} {
  func.func @_ffn_kernel_resident(%arg0: i32, %arg1: memref<16x32xf32, #tpu.memory_space<vmem>>, %arg2: memref<32x256xf32, #tpu.memory_space<vmem>>, %arg3: memref<1x256xf32, #tpu.memory_space<vmem>>, %arg4: memref<256x32xf32, #tpu.memory_space<vmem>>, %arg5: memref<1x32xf32, #tpu.memory_space<vmem>>, %arg6: memref<16x32xf32, #tpu.memory_space<vmem>>) attributes {dimension_semantics = [#tpu.dimension_semantics<parallel>], iteration_bounds = array<i64: 1>, scalar_prefetch = 0 : i64, scratch_operands = 0 : i64, tpu.core_type = #tpu.core_type<tc>, window_params = [{transform_indices = @transform_0, window_bounds = array<i64: 16, 32>}, {pipeline_mode = #tpu.pipeline_mode<synchronous>, transform_indices = @transform_1, window_bounds = array<i64: 32, 256>}, {pipeline_mode = #tpu.pipeline_mode<synchronous>, transform_indices = @transform_2, window_bounds = array<i64: 1, 256>}, {pipeline_mode = #tpu.pipeline_mode<synchronous>, transform_indices = @transform_3, window_bounds = array<i64: 256, 32>}, {pipeline_mode = #tpu.pipeline_mode<synchronous>, transform_indices = @transform_4, window_bounds = array<i64: 1, 32>}, {transform_indices = @transform_5, window_bounds = array<i64: 16, 32>}]} {
    %c0 = arith.constant 0 : index
    %c0_0 = arith.constant 0 : index
    %0 = vector.load %arg1[%c0, %c0_0] : memref<16x32xf32, #tpu.memory_space<vmem>>, vector<16x32xf32>
    %c0_1 = arith.constant 0 : index
    %c0_2 = arith.constant 0 : index
    %1 = vector.load %arg2[%c0_1, %c0_2] : memref<32x256xf32, #tpu.memory_space<vmem>>, vector<32x256xf32>
    %cst = arith.constant dense<0.000000e+00> : vector<16x256xf32>
    %2 = tpu.matmul %0, %1, %cst {dimension_numbers = #tpu.dot_dimension_numbers<[1], [0], [0], [1], [0, 0, 1, 1], [], []>} : vector<16x32xf32>, vector<32x256xf32>, vector<16x256xf32> -> vector<16x256xf32>
    %c0_3 = arith.constant 0 : index
    %c0_4 = arith.constant 0 : index
    %3 = vector.load %arg3[%c0_3, %c0_4] : memref<1x256xf32, #tpu.memory_space<vmem>>, vector<1x256xf32>
    %4 = vector.broadcast %3 : vector<1x256xf32> to vector<16x256xf32>
    %5 = arith.addf %2, %4 : vector<16x256xf32>
    %cst_5 = arith.constant 0.000000e+00 : f32
    %6 = vector.broadcast %cst_5 : f32 to vector<16x256xf32>
    %7 = arith.maximumf %5, %6 : vector<16x256xf32>
    %c0_6 = arith.constant 0 : index
    %c0_7 = arith.constant 0 : index
    %8 = vector.load %arg4[%c0_6, %c0_7] : memref<256x32xf32, #tpu.memory_space<vmem>>, vector<256x32xf32>
    %cst_8 = arith.constant dense<0.000000e+00> : vector<16x32xf32>
    %9 = tpu.matmul %7, %8, %cst_8 {dimension_numbers = #tpu.dot_dimension_numbers<[1], [0], [0], [1], [0, 0, 1, 1], [], []>} : vector<16x256xf32>, vector<256x32xf32>, vector<16x32xf32> -> vector<16x32xf32>
    %c0_9 = arith.constant 0 : index
    %c0_10 = arith.constant 0 : index
    %10 = vector.load %arg5[%c0_9, %c0_10] : memref<1x32xf32, #tpu.memory_space<vmem>>, vector<1x32xf32>
    %11 = vector.broadcast %10 : vector<1x32xf32> to vector<16x32xf32>
    %12 = arith.addf %9, %11 : vector<16x32xf32>
    %c0_11 = arith.constant 0 : index
    %c0_12 = arith.constant 0 : index
    %13 = vector.load %arg6[%c0_11, %c0_12] : memref<16x32xf32, #tpu.memory_space<vmem>>, vector<16x32xf32>
    tpu.vector_store %arg6[%c0_11, %c0_12], %12 {strides = array<i32>} : memref<16x32xf32, #tpu.memory_space<vmem>>, vector<16x32xf32>,
    return
  }
  func.func @transform_0(%arg0: i32) -> (i32, i32) {
    %c0_i32 = arith.constant 0 : i32
    %c0_i32_0 = arith.constant 0 : i32
    return %arg0, %c0_i32 : i32, i32
  }
  func.func @transform_1(%arg0: i32) -> (i32, i32) {
    %c0_i32 = arith.constant 0 : i32
    %c0_i32_0 = arith.constant 0 : i32
    %c0_i32_1 = arith.constant 0 : i32
    return %c0_i32, %c0_i32_0 : i32, i32
  }
  func.func @transform_2(%arg0: i32) -> (i32, i32) {
    %c0_i32 = arith.constant 0 : i32
    %c0_i32_0 = arith.constant 0 : i32
    %c0_i32_1 = arith.constant 0 : i32
    return %c0_i32, %c0_i32_0 : i32, i32
  }
  func.func @transform_3(%arg0: i32) -> (i32, i32) {
    %c0_i32 = arith.constant 0 : i32
    %c0_i32_0 = arith.constant 0 : i32
    %c0_i32_1 = arith.constant 0 : i32
    return %c0_i32, %c0_i32_0 : i32, i32
  }
  func.func @transform_4(%arg0: i32) -> (i32, i32) {
    %c0_i32 = arith.constant 0 : i32
    %c0_i32_0 = arith.constant 0 : i32
    %c0_i32_1 = arith.constant 0 : i32
    return %c0_i32, %c0_i32_0 : i32, i32
  }
  func.func @transform_5(%arg0: i32) -> (i32, i32) {
    %c0_i32 = arith.constant 0 : i32
    %c0_i32_0 = arith.constant 0 : i32
    return %arg0, %c0_i32 : i32, i32
  }
}

</mosaic_0001>

<llo_original>
// kernel: positionwise_feed_forward.1
$region0: #{positionwise_feed_forward.1}
  #allocation0 [shape = 'u32[]', space=smem, size = 0x4, offset = 0x4, fixed_abs, tag = 'smem constant byte address 0x4 - core index']
  #allocation1 [shape = 'u32[144,128]{1,0:T(1,128)}', space=vmem, size = 0x12000, scoped, tag = 'internal scratch']
  %s0 = inlined_call_operand.vmem [shape: f32[16,32], index: 0, kind: input, shape index: {}]
  %s1 = inlined_call_operand.vmem [shape: f32[32,256], index: 1, kind: input, shape index: {}]
  %s2 = inlined_call_operand.vmem [shape: f32[1,256], index: 2, kind: input, shape index: {}]
  %s3 = inlined_call_operand.vmem [shape: f32[256,32], index: 3, kind: input, shape index: {}]
  %s4 = inlined_call_operand.vmem [shape: f32[1,32], index: 4, kind: input, shape index: {}]
  %s5 = inlined_call_operand.hbm [shape: f32[16,32], index: 5, kind: output, shape index: {}]
  %s6 = sld [smem:[#allocation0]]
  $region30: #{positionwise_feed_forward.1} parent=0
    _
  %s8 = ssub.s32 1, %s6
  %s9 = scalar_select 0, %s8, %s6
  $region1: #{positionwise_feed_forward.1} parent=0
    #allocation2 [shape = 'u8[8192]{0}', space=vmem, size = 0x2000, scoped, tag = 'output window, operand 0, single buffered']
    #allocation3 [shape = 's32[1]{0}', space=sflag, size = 0x4, scoped, tag = 'scoped memory for positionwise_feed_forward.1']
    %10 = vsyncpa [#allocation3], 0
    // Predicated region
    $region2: #{positionwise_feed_forward.1} parent=1 // pred_check
      _
    $region3: #{positionwise_feed_forward.1} parent=1 // pred_check_branch
      %12 = sbr.rel (0) target = $region5
    $region4: #{positionwise_feed_forward.1} parent=1 // pred_region
      _
    $region5: #{positionwise_feed_forward.1} parent=1 // pred_fallthru
      _
    // Predicated region
    $region6: #{positionwise_feed_forward.1} parent=1 // pred_check
      _
    $region7: #{positionwise_feed_forward.1} parent=1 // pred_check_branch
      %14 = sbr.rel (0) target = $region9
    $region8: #{positionwise_feed_forward.1} parent=1 // pred_region
      _
    $region9: #{positionwise_feed_forward.1} parent=1 // pred_fallthru
      _
    // Predicated region
    $region10: #{positionwise_feed_forward.1} parent=1 // pred_check
      _
    $region11: #{positionwise_feed_forward.1} parent=1 // pred_check_branch
      %16 = sbr.rel (0) target = $region13
    $region12: #{positionwise_feed_forward.1} parent=1 // pred_region
      _
    $region13: #{positionwise_feed_forward.1} parent=1 // pred_fallthru
      _
    // Predicated region
    $region14: #{positionwise_feed_forward.1} parent=1 // pred_check
      _
    $region15: #{positionwise_feed_forward.1} parent=1 // pred_check_branch
      %18 = sbr.rel (0) target = $region17
    $region16: #{positionwise_feed_forward.1} parent=1 // pred_region
      _
    $region17: #{positionwise_feed_forward.1} parent=1 // pred_fallthru
      _
    // Predicated region
    $region18: #{positionwise_feed_forward.1} parent=1 // pred_check
      _
    $region19: #{positionwise_feed_forward.1} parent=1 // pred_check_branch
      %20 = sbr.rel (0) target = $region21
    $region20: #{positionwise_feed_forward.1} parent=1 // pred_region
      _
    $region21: #{positionwise_feed_forward.1} parent=1 // pred_fallthru
      _
    %v21 = vld [vmem:[%s0] sm:$0xff]
    %v22 = vld [vmem:[%s0 + $0x8] sm:$0xff]
    %v23 = vld [vmem:[%s1] sm:$0xff]
    %v24 = vld [vmem:[%s1 + $0x8] sm:$0xff]
    %v25 = vld [vmem:[%s1 + $0x10] sm:$0xff]
    %v26 = vld [vmem:[%s1 + $0x18] sm:$0xff]
    %v27 = vld [vmem:[%s1 + $0x20] sm:$0xff]
    %v28 = vld [vmem:[%s1 + $0x28] sm:$0xff]
    %v29 = vld [vmem:[%s1 + $0x30] sm:$0xff]
    %v30 = vld [vmem:[%s1 + $0x38] sm:$0xff]
    %v31 = vld [vmem:[%s2] sm:$0x3]
    %v33 = vlaneseq
    %v34 = vshrl.u32 %v33, 7
    %v35 = vsub.s32 0, %v34
    %v36 = vrot.slane %v31, %v35
    %v37 = vlaneseq
    %v38 = vshrl.u32 %v37, 7
    %v39 = vsub.s32 1, %v38
    %v40 = vrot.slane %v31, %v39
    %vm43 = vcmask 261120
    %v45 = vsel %vm43, %v21, 0
    %v48 = vsel %vm43, %v22, 0
    %50 = vmatprep.subr.mxu0 %v24
    %51 = vmatpush1.msra.mxu0 %v23
    %52 = vmatprep.subr.mxu0 %v26
    %53 = vmatpush1.msra.mxu0 %v25
    %54 = vmatprep.subr.mxu0 %v28
    %55 = vmatpush1.msra.mxu0 %v27
    %56 = vmatprep.subr.mxu0 %v30
    %57 = vmatpush1.msra.mxu0 %v29
    %58 = vmatprep.subr.mxu0 0.0
    %59 = vmatpush1.msra.mxu0 0.0
    %60 = vmatprep.subr.mxu0 0.0
    %61 = vmatpush1.msra.mxu0 0.0
    %62 = vmatprep.subr.mxu0 0.0
    %63 = vmatpush1.msra.mxu0 0.0
    %64 = vmatprep.subr.mxu0 0.0
    %65 = vmatpush1.msra.mxu0 0.0
    %66 = vmatprep.subr.mxu0 0.0
    %67 = vmatpush1.msra.mxu0 0.0
    %68 = vmatprep.subr.mxu0 0.0
    %69 = vmatpush1.msra.mxu0 0.0
    %70 = vmatprep.subr.mxu0 0.0
    %71 = vmatpush1.msra.mxu0 0.0
    %72 = vmatprep.subr.mxu0 0.0
    %73 = vmatpush1.msra.mxu0 0.0
    %74 = vmatprep.subr.mxu0 0.0
    %75 = vmatpush1.msra.mxu0 0.0
    %76 = vmatprep.subr.mxu0 0.0
    %77 = vmatpush1.msra.mxu0 0.0
    %78 = vmatprep.subr.mxu0 0.0
    %79 = vmatpush1.msra.mxu0 0.0
    %80 = vmatprep.subr.mxu0 0.0
    %81 = vmatpush1.msra.mxu0 0.0
    %82 = vmatprep.subr.mxu0 0.0
    %83 = vmatpush1.msra.mxu0 0.0
    %84 = vmatprep.subr.mxu0 0.0
    %85 = vmatpush1.msra.mxu0 0.0
    %86 = vmatprep.subr.mxu0 0.0
    %87 = vmatpush1.msra.mxu0 0.0
    %88 = vmatprep.subr.mxu0 0.0
    %89 = vmatpush1.msra.mxu0 0.0
    %90 = vmatprep.subr.mxu0 0.0
    %91 = vmatpush1.msra.mxu0 0.0
    %92 = vmatprep.subr.mxu0 0.0
    %93 = vmatpush1.msra.mxu0 0.0
    %94 = vmatprep.subr.mxu0 0.0
    %95 = vmatpush1.msra.mxu0 0.0
    %96 = vmatprep.subr.mxu0 0.0
    %97 = vmatpush1.msra.mxu0 0.0
    %98 = vmatprep.subr.mxu0 0.0
    %99 = vmatpush1.msra.mxu0 0.0
    %100 = vmatprep.subr.mxu0 0.0
    %101 = vmatpush1.msra.mxu0 0.0
    %102 = vmatprep.subr.mxu0 0.0
    %103 = vmatpush1.msra.mxu0 0.0
    %104 = vmatprep.subr.mxu0 0.0
    %105 = vmatpush1.msra.mxu0 0.0
    %106 = vmatprep.subr.mxu0 0.0
    %107 = vmatpush1.msra.mxu0 0.0
    %108 = vmatprep.subr.mxu0 0.0
    %109 = vmatpush1.msra.mxu0 0.0
    %110 = vmatprep.subr.mxu0 0.0
    %111 = vmatpush1.msra.mxu0 0.0
    %112 = vmatprep.subr.mxu0 0.0
    %113 = vmatpush1.msra.mxu0 0.0
    %114 = vmatprep.mubr.f32.mxu0 0.0
    %115 = vmatmul.mubr.f32.gmra.mrb[0].mxu0 %v45
    %v116 = vpop.f32.mrb[0].mxu0
    %v117 = vadd.f32 %v36, %v116
    %v118 = vpop.f32.mrb[0].mxu0
    %v119 = vadd.f32 %v40, %v118
    %120 = vmatprep.mubr.f32.mxu0 0.0
    %121 = vmatmul.mubr.f32.gmra.mrb[0].mxu0 %v48
    %v122 = vpop.f32.mrb[0].mxu0
    %v123 = vadd.f32 %v36, %v122
    %v124 = vpop.f32.mrb[0].mxu0
    %v125 = vadd.f32 %v40, %v124
    %126 = vdwg.mxu0
    %v127 = vmax.f32 %v117, 0.0
    %v128 = vmax.f32 %v119, 0.0
    %v129 = vmax.f32 %v123, 0.0
    %v130 = vmax.f32 %v125, 0.0
    %v131 = vld [vmem:[%s3] sm:$0xff]
    %v132 = vld [vmem:[%s3 + $0x8] sm:$0xff]
    %v133 = vld [vmem:[%s3 + $0x10] sm:$0xff]
    %v134 = vld [vmem:[%s3 + $0x18] sm:$0xff]
    %v135 = vld [vmem:[%s3 + $0x20] sm:$0xff]
    %v136 = vld [vmem:[%s3 + $0x28] sm:$0xff]
    %v137 = vld [vmem:[%s3 + $0x30] sm:$0xff]
    %v138 = vld [vmem:[%s3 + $0x38] sm:$0xff]
    %v139 = vld [vmem:[%s3 + $0x40] sm:$0xff]
    %v140 = vld [vmem:[%s3 + $0x48] sm:$0xff]
    %v141 = vld [vmem:[%s3 + $0x50] sm:$0xff]
    %v142 = vld [vmem:[%s3 + $0x58] sm:$0xff]
    %v143 = vld [vmem:[%s3 + $0x60] sm:$0xff]
    %v144 = vld [vmem:[%s3 + $0x68] sm:$0xff]
    %v145 = vld [vmem:[%s3 + $0x70] sm:$0xff]
    %v146 = vld [vmem:[%s3 + $0x78] sm:$0xff]
    %v147 = vld [vmem:[%s3 + $0x80] sm:$0xff]
    %v148 = vld [vmem:[%s3 + $0x88] sm:$0xff]
    %v149 = vld [vmem:[%s3 + $0x90] sm:$0xff]
    %v150 = vld [vmem:[%s3 + $0x98] sm:$0xff]
    %v151 = vld [vmem:[%s3 + $0xa0] sm:$0xff]
    %v152 = vld [vmem:[%s3 + $0xa8] sm:$0xff]
    %v153 = vld [vmem:[%s3 + $0xb0] sm:$0xff]
    %v154 = vld [vmem:[%s3 + $0xb8] sm:$0xff]
    %v155 = vld [vmem:[%s3 + $0xc0] sm:$0xff]
    %v156 = vld [vmem:[%s3 + $0xc8] sm:$0xff]
    %v157 = vld [vmem:[%s3 + $0xd0] sm:$0xff]
    %v158 = vld [vmem:[%s3 + $0xd8] sm:$0xff]
    %v159 = vld [vmem:[%s3 + $0xe0] sm:$0xff]
    %v160 = vld [vmem:[%s3 + $0xe8] sm:$0xff]
    %v161 = vld [vmem:[%s3 + $0xf0] sm:$0xff]
    %v162 = vld [vmem:[%s3 + $0xf8] sm:$0xff]
    %v163 = vld [vmem:[%s4] sm:$0x1]
    %v165 = vlaneseq
    %v166 = vshrl.u32 %v165, 7
    %v167 = vsub.s32 0, %v166
    %v168 = vrot.slane %v163, %v167
    %170 = vmatprep.subr.mxu0 0.0
    %171 = vmatpush1.msra.mxu0 %v131
    %172 = vmatprep.subr.mxu0 0.0
    %173 = vmatpush1.msra.mxu0 %v132
    %174 = vmatprep.subr.mxu0 0.0
    %175 = vmatpush1.msra.mxu0 %v133
    %176 = vmatprep.subr.mxu0 0.0
    %177 = vmatpush1.msra.mxu0 %v134
    %178 = vmatprep.subr.mxu0 0.0
    %179 = vmatpush1.msra.mxu0 %v135
    %180 = vmatprep.subr.mxu0 0.0
    %181 = vmatpush1.msra.mxu0 %v136
    %182 = vmatprep.subr.mxu0 0.0
    %183 = vmatpush1.msra.mxu0 %v137
    %184 = vmatprep.subr.mxu0 0.0
    %185 = vmatpush1.msra.mxu0 %v138
    %186 = vmatprep.subr.mxu0 0.0
    %187 = vmatpush1.msra.mxu0 %v139
    %188 = vmatprep.subr.mxu0 0.0
    %189 = vmatpush1.msra.mxu0 %v140
    %190 = vmatprep.subr.mxu0 0.0
    %191 = vmatpush1.msra.mxu0 %v141
    %192 = vmatprep.subr.mxu0 0.0
    %193 = vmatpush1.msra.mxu0 %v142
    %194 = vmatprep.subr.mxu0 0.0
    %195 = vmatpush1.msra.mxu0 %v143
    %196 = vmatprep.subr.mxu0 0.0
    %197 = vmatpush1.msra.mxu0 %v144
    %198 = vmatprep.subr.mxu0 0.0
    %199 = vmatpush1.msra.mxu0 %v145
    %200 = vmatprep.subr.mxu0 0.0
    %201 = vmatpush1.msra.mxu0 %v146
    %202 = vmatprep.subr.mxu0 0.0
    %203 = vmatpush1.msra.mxu0 %v147
    %204 = vmatprep.subr.mxu0 0.0
    %205 = vmatpush1.msra.mxu0 %v148
    %206 = vmatprep.subr.mxu0 0.0
    %207 = vmatpush1.msra.mxu0 %v149
    %208 = vmatprep.subr.mxu0 0.0
    %209 = vmatpush1.msra.mxu0 %v150
    %210 = vmatprep.subr.mxu0 0.0
    %211 = vmatpush1.msra.mxu0 %v151
    %212 = vmatprep.subr.mxu0 0.0
    %213 = vmatpush1.msra.mxu0 %v152
    %214 = vmatprep.subr.mxu0 0.0
    %215 = vmatpush1.msra.mxu0 %v153
    %216 = vmatprep.subr.mxu0 0.0
    %217 = vmatpush1.msra.mxu0 %v154
    %218 = vmatprep.subr.mxu0 0.0
    %219 = vmatpush1.msra.mxu0 %v155
    %220 = vmatprep.subr.mxu0 0.0
    %221 = vmatpush1.msra.mxu0 %v156
    %222 = vmatprep.subr.mxu0 0.0
    %223 = vmatpush1.msra.mxu0 %v157
    %224 = vmatprep.subr.mxu0 0.0
    %225 = vmatpush1.msra.mxu0 %v158
    %226 = vmatprep.subr.mxu0 0.0
    %227 = vmatpush1.msra.mxu0 %v159
    %228 = vmatprep.subr.mxu0 0.0
    %229 = vmatpush1.msra.mxu0 %v160
    %230 = vmatprep.subr.mxu0 0.0
    %231 = vmatpush1.msra.mxu0 %v161
    %232 = vmatprep.subr.mxu0 0.0
    %233 = vmatpush1.msra.mxu0 %v162
    %234 = vmatprep.mubr.f32.mxu0 %v128
    %235 = vmatmul.mubr.f32.gmra.mrb[0].mxu0 %v127
    %v236 = vpop.f32.mrb[0].mxu0
    %v237 = vadd.f32 %v168, %v236
    %v238 = vpop.f32.mrb[0].mxu0
    %239 = vmatprep.mubr.f32.mxu0 %v130
    %240 = vmatmul.mubr.f32.gmra.mrb[0].mxu0 %v129
    %v241 = vpop.f32.mrb[0].mxu0
    %v242 = vadd.f32 %v168, %v241
    %v243 = vpop.f32.mrb[0].mxu0
    %244 = vdwg.mxu0
    %245 = vst.msk [vmem:[#allocation2] sm:$0xff] %vm43, %v237
    %246 = vst.msk [vmem:[#allocation2 + $0x8] sm:$0xff] %vm43, %v242
    // Predicated region
    $region22: #{positionwise_feed_forward.1} parent=1 // pred_check
      _
    $region23: #{positionwise_feed_forward.1} parent=1 // pred_check_branch
      %248 = sbr.rel (0) target = $region25
    $region24: #{positionwise_feed_forward.1} parent=1 // pred_region
      %s250 = ssub.s32 256, 256
      %251 = vsyncadd [#allocation3], %s250
      %s252 = sshll.u32 [#allocation2], 4
      %s253 = int_to_ptr.vmem [resolvable:$true] %s252
      %258 = dma.vmem_to_hbm [thread:$0]  %s253, 256, %s5, [#allocation3], 128, 128, 8
    $region25: #{positionwise_feed_forward.1} parent=1 // pred_fallthru
      _
    // Predicated region
    $region26: #{positionwise_feed_forward.1} parent=1 // pred_check
      _
    $region27: #{positionwise_feed_forward.1} parent=1 // pred_check_branch
      %260 = sbr.rel (0) target = $region29
    $region28: #{positionwise_feed_forward.1} parent=1 // pred_region
      %261 = dma.done [#allocation3], 256
    $region29: #{positionwise_feed_forward.1} parent=1 // pred_fallthru
      _
    %262 = vsyncpa [#allocation3], 1

</llo_original>
